<compile_context>
chip_gen: v7x
topology: tpu7x:2x2x1
jax: 0.10.0
libtpu: 0.0.40
codegen_flags: <defaults>
</compile_context>

<pallas_src>
import jax
import jax.numpy as jnp
import numpy as np
from jax.experimental import pallas as pl
from jax.experimental.pallas import tpu as pltpu


def _round_up(x: int, m: int) -> int:
    return (x + m - 1) // m * m


def _vmem_capacity_bytes() -> int:
    """Physical VMEM per core; conservative (v7x-sized) fallback if unknown."""
    try:
        v = int(getattr(pltpu.get_tpu_info(), "vmem_capacity_bytes", 0))
        if v > 0:
            return v
    except Exception:
        pass
    return 64 << 20


def _tensorcores_per_chip() -> int:
    """TensorCores per chip (2 on v7x, 1 on v5e/v6e); default 1 if unknown."""
    try:
        info = pltpu.get_tpu_info()
        for name in ("num_cores", "core_count", "num_tensorcores"):
            v = getattr(info, name, None)
            if v is not None and int(v) >= 1:
                return int(v)
    except Exception:
        pass
    return 1


def _pick_batch_tile(B: int, S: int, D: int, C_pad: int,
                     num_cores: int, budget_bytes: int) -> int:
    """Pick batch tile TB: the largest tile whose double-buffered x + out
    blocks fit the budget; multiple of 8 unless one block covers the whole
    batch exactly.  Dual-TC chips get >= num_cores (near-)equal grid steps."""
    per_row = 2 * (S * D + C_pad) * 4          # double-buffered x row + out row
    max_tb = max(1, budget_bytes // per_row)

    if B <= max_tb:
        tb = B                                  # single exact block
    else:
        tb = max(8, (min(max_tb, 1024) // 8) * 8)

    # v7x (2 TCs): give megacore >= num_cores parallel steps with equal,
    # 8-aligned blocks; single-TC v5e/v6e keep the single largest block.
    if num_cores >= 2 and B >= 8 * num_cores and pl.cdiv(B, tb) < num_cores:
        tb = max(8, _round_up(pl.cdiv(B, num_cores), 8))
    return tb


def _head_kernel(x_ref, wred_ref, gamma_ref, beta_ref, wlin_ref, blin_ref,
                 out_ref):
    x = x_ref[...]                                          # (TB, S, D) f32

    # --- pooling scores: Linear(D, 1).  The scalar bias shifts every position
    # equally and softmax is shift-invariant, so it cancels exactly (omitted).
    scores = jnp.sum(x * wred_ref[...], axis=-1)            # (TB, S)

    # --- softmax over S; 1/denominator deferred until after pooling ---
    m = jnp.max(scores, axis=-1, keepdims=True)             # (TB, 1)
    e = jnp.exp(scores - m)                                  # (TB, S)
    denom = jnp.sum(e, axis=-1, keepdims=True)               # (TB, 1)

    # --- un-normalized attention-weighted sum over S as a batched (1,S)@(S,D)
    # matmul on the (otherwise idle) MXU: no (TB,S,D) broadcast product, no
    # sublane reduction, no extra spill pass over the block ---
    pooled = jnp.einsum("bqs,bsd->bqd", e[:, None, :], x,
                        preferred_element_type=jnp.float32)[:, 0, :]  # (TB, D)
    pooled = pooled * pl.reciprocal(denom, approx=False)     # exact softmax

    # --- LayerNorm over d_model (eps = 1e-5, elementwise affine) ---
    mean = jnp.mean(pooled, axis=-1, keepdims=True)
    var = jnp.mean(jnp.square(pooled - mean), axis=-1, keepdims=True)
    normed = (pooled - mean) * jax.lax.rsqrt(var + 1e-5)
    normed = normed * gamma_ref[...] + beta_ref[...]         # (TB, D)

    # --- classifier: (TB, D) @ (D, C_pad) MXU matmul, lane-dense store ---
    logits = jnp.dot(normed, wlin_ref[...],
                     preferred_element_type=jnp.float32) + blin_ref[...]
    out_ref[...] = logits.astype(out_ref.dtype)


def classification_head_pooling(x, w_red, b_red, gamma, beta, w_lin, b_lin,
                                *, x_block_budget_bytes=None,
                                vmem_limit_bytes=None):
    """x: (B, S, D) f32. Returns (B, n_classes) f32."""
    B, S, D = x.shape
    C = w_lin.shape[1]
    del b_red  # softmax is shift-invariant -> Linear(D, 1) bias cancels exactly

    C_pad = _round_up(C, 128)                 # lane-dense output stores
    cap = _vmem_capacity_bytes()
    num_cores = _tensorcores_per_chip()

    if x_block_budget_bytes is None:
        # ~24 MiB on 128 MiB-VMEM parts (v5e/v6e), ~16 MiB on 64 MiB v7x:
        # large blocks amortize the ~0.35 us/step overhead while total usage
        # stays under the default scoped-VMEM limits.
        x_block_budget_bytes = min(cap // 4, 24 << 20)

    TB = _pick_batch_tile(B, S, D, C_pad, num_cores, x_block_budget_bytes)
    n_blocks = pl.cdiv(B, TB)
    B_out = n_blocks * TB     # output-only padding: pure allocation, x is NOT
                              # padded and sees no extra HBM pass

    # VMEM accounting (double-buffered x/out blocks + single-buffered consts).
    need = 2 * TB * (S * D + C_pad) * 4 + (3 * D + D * C_pad + C_pad) * 4
    if vmem_limit_bytes is None:
        vmem_limit_bytes = int(min(cap * 9 // 10,
                                   max(32 << 20, need + (8 << 20))))
    # TODO(synk): if even an 8-row x block exceeds VMEM (huge S*D), add a
    # second "arbitrary" grid axis over S-chunks with online-softmax
    # accumulation instead of growing vmem_limit_bytes.

    w_red_2d = w_red.reshape(1, D)
    gamma_2d = gamma.reshape(1, D)
    beta_2d = beta.reshape(1, D)
    w_lin_p = jnp.pad(w_lin, ((0, 0), (0, C_pad - C)))
    b_lin_p = jnp.pad(b_lin.reshape(1, C), ((0, 0), (0, C_pad - C)))

    def build(single_buffer_consts):
        pipe = pl.Buffered(buffer_count=1) if single_buffer_consts else None
        const = lambda shape: pl.BlockSpec(shape, lambda b: (0,) * len(shape),
                                           pipeline_mode=pipe)
        return pl.pallas_call(
            _head_kernel,
            out_shape=jax.ShapeDtypeStruct((B_out, C_pad), jnp.float32),
            grid=(n_blocks,),
            in_specs=[
                pl.BlockSpec((TB, S, D), lambda b: (b, 0, 0)),  # x batch tile
                const((1, D)),        # w_red
                const((1, D)),        # gamma
                const((1, D)),        # beta
                const((D, C_pad)),    # w_lin (laid out (D, C))
                const((1, C_pad)),    # b_lin
            ],
            out_specs=pl.BlockSpec((TB, C_pad), lambda b: (b, 0)),
            compiler_params=pltpu.CompilerParams(
                dimension_semantics=("parallel",),
                vmem_limit_bytes=vmem_limit_bytes),
        )

    args = (x, w_red_2d, gamma_2d, beta_2d, w_lin_p, b_lin_p)
    try:
        out = build(True)(*args)    # constants single-buffered (halves their VMEM)
    except Exception:
        out = build(False)(*args)   # robust fallback: default double buffering
    return out[:B, :C]


def _reference(x, w_red, b_red, gamma, beta, w_lin, b_lin):
    """Pure-JAX reference matching the PyTorch forward exactly."""
    scores = x @ w_red.reshape(-1, 1) + b_red                    # (B, S, 1)
    attn = jax.nn.softmax(jnp.swapaxes(scores, -1, 1), axis=-1)  # (B, 1, S)
    pooled = jnp.squeeze(attn @ x, axis=1)                       # (B, D)
    mean = pooled.mean(-1, keepdims=True)
    var = ((pooled - mean) ** 2).mean(-1, keepdims=True)
    normed = (pooled - mean) / jnp.sqrt(var + 1e-5) * gamma + beta
    return normed @ w_lin + b_lin


def _make_params(key, D, C):
    k1, k2, k3, k4 = jax.random.split(key, 4)
    w_red = jax.random.normal(k1, (D,), dtype=jnp.float32) * (1.0 / np.sqrt(D))
    b_red = jnp.float32(0.1) * jnp.ones((1,), dtype=jnp.float32)
    gamma = 1.0 + 0.1 * jax.random.normal(k2, (D,), dtype=jnp.float32)
    beta = 0.1 * jax.random.normal(k3, (D,), dtype=jnp.float32)
    w_lin = jax.random.normal(k4, (D, C), dtype=jnp.float32) * (1.0 / np.sqrt(D))
    b_lin = jnp.float32(0.01) * jnp.ones((C,), dtype=jnp.float32)
    return w_red, b_red, gamma, beta, w_lin, b_lin


if __name__ == "__main__":
    key = jax.random.PRNGKey(0)

    # --- small shapes (module intent: seq, d_model, classes) ---
    B, S, D, C = 2, 8, 32, 10
    kx, kp = jax.random.split(key)
    x = jax.random.normal(kx, (B, S, D), dtype=jnp.float32)
    params = _make_params(kp, D, C)
    out = jax.block_until_ready(classification_head_pooling(x, *params))
    np.testing.assert_allclose(np.asarray(out),
                               np.asarray(_reference(x, *params)),
                               rtol=1e-5, atol=1e-5)

    # --- larger shapes: class padding; dual-TC chips auto-split the batch ---
    B2, S2, D2, C2 = 20, 16, 128, 10
    kx2, kp2 = jax.random.split(jax.random.PRNGKey(1))
    x2 = jax.random.normal(kx2, (B2, S2, D2), dtype=jnp.float32)
    params2 = _make_params(kp2, D2, C2)
    out2 = jax.block_until_ready(classification_head_pooling(x2, *params2))
    ref2 = np.asarray(_reference(x2, *params2))
    np.testing.assert_allclose(np.asarray(out2), ref2, rtol=1e-4, atol=1e-4)

    # --- force several grid steps with a ragged last block (B=20, TB=8):
    #     exercises the unpadded-x / cdiv-grid path on every chip generation ---
    tiny_budget = 8 * 2 * (S2 * D2 + 128) * 4
    out3 = jax.block_until_ready(
        classification_head_pooling(x2, *params2,
                                    x_block_budget_bytes=tiny_budget))
    np.testing.assert_allclose(np.asarray(out3), ref2, rtol=1e-4, atol=1e-4)

    print("KERNEL_OK")
</pallas_src>

<mosaic_0001>
module attributes {stable_mosaic.version = 11 : i64} {
  func.func @_head_kernel(%arg0: i32, %arg1: memref<2x8x32xf32, #tpu.memory_space<vmem>>, %arg2: memref<1x32xf32, #tpu.memory_space<vmem>>, %arg3: memref<1x32xf32, #tpu.memory_space<vmem>>, %arg4: memref<1x32xf32, #tpu.memory_space<vmem>>, %arg5: memref<32x128xf32, #tpu.memory_space<vmem>>, %arg6: memref<1x128xf32, #tpu.memory_space<vmem>>, %arg7: memref<2x128xf32, #tpu.memory_space<vmem>>) attributes {dimension_semantics = [#tpu.dimension_semantics<parallel>], iteration_bounds = array<i64: 1>, scalar_prefetch = 0 : i64, scratch_operands = 0 : i64, tpu.core_type = #tpu.core_type<tc>, window_params = [{transform_indices = @transform_0, window_bounds = array<i64: 2, 8, 32>}, {pipeline_mode = #tpu.pipeline_mode<synchronous>, transform_indices = @transform_1, window_bounds = array<i64: 1, 32>}, {pipeline_mode = #tpu.pipeline_mode<synchronous>, transform_indices = @transform_2, window_bounds = array<i64: 1, 32>}, {pipeline_mode = #tpu.pipeline_mode<synchronous>, transform_indices = @transform_3, window_bounds = array<i64: 1, 32>}, {pipeline_mode = #tpu.pipeline_mode<synchronous>, transform_indices = @transform_4, window_bounds = array<i64: 32, 128>}, {pipeline_mode = #tpu.pipeline_mode<synchronous>, transform_indices = @transform_5, window_bounds = array<i64: 1, 128>}, {transform_indices = @transform_6, window_bounds = array<i64: 2, 128>}]} {
    %c0 = arith.constant 0 : index
    %c0_0 = arith.constant 0 : index
    %c0_1 = arith.constant 0 : index
    %0 = vector.load %arg1[%c0, %c0_0, %c0_1] : memref<2x8x32xf32, #tpu.memory_space<vmem>>, vector<2x8x32xf32>
    %c0_2 = arith.constant 0 : index
    %c0_3 = arith.constant 0 : index
    %1 = vector.load %arg2[%c0_2, %c0_3] : memref<1x32xf32, #tpu.memory_space<vmem>>, vector<1x32xf32>
    %2 = vector.shape_cast %1 : vector<1x32xf32> to vector<1x1x32xf32>
    %3 = vector.broadcast %2 : vector<1x1x32xf32> to vector<2x8x32xf32>
    %4 = arith.mulf %0, %3 : vector<2x8x32xf32>
    %cst = arith.constant dense<0.000000e+00> : vector<2x8xf32>
    %5 = vector.multi_reduction <add>, %4, %cst [2] : vector<2x8x32xf32> to vector<2x8xf32>
    %cst_4 = arith.constant dense<0xFF800000> : vector<2xf32>
    %6 = vector.multi_reduction <maximumf>, %5, %cst_4 [1] : vector<2x8xf32> to vector<2xf32>
    %7 = vector.shape_cast %6 : vector<2xf32> to vector<2x1xf32>
    %8 = vector.broadcast %7 : vector<2x1xf32> to vector<2x8xf32>
    %9 = arith.subf %5, %8 : vector<2x8xf32>
    %10 = math.exp %9 : vector<2x8xf32>
    %cst_5 = arith.constant dense<0.000000e+00> : vector<2xf32>
    %11 = vector.multi_reduction <add>, %10, %cst_5 [1] : vector<2x8xf32> to vector<2xf32>
    %12 = vector.shape_cast %11 : vector<2xf32> to vector<2x1xf32>
    %13 = vector.shape_cast %10 : vector<2x8xf32> to vector<2x1x8xf32>
    "tpu.trace_start"() <{level = 10 : i32, message = "bqs,bsd->bqd"}> : () -> ()
    %cst_6 = arith.constant dense<0.000000e+00> : vector<2x1x32xf32>
    %14 = tpu.matmul %13, %0, %cst_6 {dimension_numbers = #tpu.dot_dimension_numbers<[2], [1], [1], [2], [0, 0, 0, 1, 1, 2], [0], [0]>} : vector<2x1x8xf32>, vector<2x8x32xf32>, vector<2x1x32xf32> -> vector<2x1x32xf32>
    "tpu.trace_stop"() : () -> ()
    %15 = vector.shape_cast %14 : vector<2x1x32xf32> to vector<2x32xf32>
    %16 = tpu.reciprocal %12 : vector<2x1xf32> -> vector<2x1xf32>
    %17 = vector.broadcast %16 : vector<2x1xf32> to vector<2x32xf32>
    %18 = arith.mulf %15, %17 : vector<2x32xf32>
    %cst_7 = arith.constant dense<0.000000e+00> : vector<2xf32>
    %19 = vector.multi_reduction <add>, %18, %cst_7 [1] : vector<2x32xf32> to vector<2xf32>
    %20 = vector.shape_cast %19 : vector<2xf32> to vector<2x1xf32>
    %cst_8 = arith.constant 3.200000e+01 : f32
    %21 = vector.broadcast %cst_8 : f32 to vector<2x1xf32>
    %22 = arith.divf %20, %21 : vector<2x1xf32>
    %23 = vector.broadcast %22 : vector<2x1xf32> to vector<2x32xf32>
    %24 = arith.subf %18, %23 : vector<2x32xf32>
    %25 = arith.mulf %24, %24 : vector<2x32xf32>
    %cst_9 = arith.constant dense<0.000000e+00> : vector<2xf32>
    %26 = vector.multi_reduction <add>, %25, %cst_9 [1] : vector<2x32xf32> to vector<2xf32>
    %27 = vector.shape_cast %26 : vector<2xf32> to vector<2x1xf32>
    %cst_10 = arith.constant 3.200000e+01 : f32
    %28 = vector.broadcast %cst_10 : f32 to vector<2x1xf32>
    %29 = arith.divf %27, %28 : vector<2x1xf32>
    %30 = vector.broadcast %22 : vector<2x1xf32> to vector<2x32xf32>
    %31 = arith.subf %18, %30 : vector<2x32xf32>
    %cst_11 = arith.constant 9.99999974E-6 : f32
    %32 = vector.broadcast %cst_11 : f32 to vector<2x1xf32>
    %33 = arith.addf %29, %32 : vector<2x1xf32>
    %34 = math.rsqrt %33 : vector<2x1xf32>
    %35 = vector.broadcast %34 : vector<2x1xf32> to vector<2x32xf32>
    %36 = arith.mulf %31, %35 : vector<2x32xf32>
    %c0_12 = arith.constant 0 : index
    %c0_13 = arith.constant 0 : index
    %37 = vector.load %arg3[%c0_12, %c0_13] : memref<1x32xf32, #tpu.memory_space<vmem>>, vector<1x32xf32>
    %38 = vector.broadcast %37 : vector<1x32xf32> to vector<2x32xf32>
    %39 = arith.mulf %36, %38 : vector<2x32xf32>
    %c0_14 = arith.constant 0 : index
    %c0_15 = arith.constant 0 : index
    %40 = vector.load %arg4[%c0_14, %c0_15] : memref<1x32xf32, #tpu.memory_space<vmem>>, vector<1x32xf32>
    %41 = vector.broadcast %40 : vector<1x32xf32> to vector<2x32xf32>
    %42 = arith.addf %39, %41 : vector<2x32xf32>
    %c0_16 = arith.constant 0 : index
    %c0_17 = arith.constant 0 : index
    %43 = vector.load %arg5[%c0_16, %c0_17] : memref<32x128xf32, #tpu.memory_space<vmem>>, vector<32x128xf32>
    %cst_18 = arith.constant dense<0.000000e+00> : vector<2x128xf32>
    %44 = tpu.matmul %42, %43, %cst_18 {dimension_numbers = #tpu.dot_dimension_numbers<[1], [0], [0], [1], [0, 0, 1, 1], [], []>} : vector<2x32xf32>, vector<32x128xf32>, vector<2x128xf32> -> vector<2x128xf32>
    %c0_19 = arith.constant 0 : index
    %c0_20 = arith.constant 0 : index
    %45 = vector.load %arg6[%c0_19, %c0_20] : memref<1x128xf32, #tpu.memory_space<vmem>>, vector<1x128xf32>
    %46 = vector.broadcast %45 : vector<1x128xf32> to vector<2x128xf32>
    %47 = arith.addf %44, %46 : vector<2x128xf32>
    %c0_21 = arith.constant 0 : index
    %c0_22 = arith.constant 0 : index
    %48 = vector.load %arg7[%c0_21, %c0_22] : memref<2x128xf32, #tpu.memory_space<vmem>>, vector<2x128xf32>
    tpu.vector_store %arg7[%c0_21, %c0_22], %47 {strides = array<i32>} : memref<2x128xf32, #tpu.memory_space<vmem>>, vector<2x128xf32>,
    return
  }
  func.func @transform_0(%arg0: i32) -> (i32, i32, i32) {
    %c0_i32 = arith.constant 0 : i32
    %c0_i32_0 = arith.constant 0 : i32
    %c0_i32_1 = arith.constant 0 : i32
    return %arg0, %c0_i32, %c0_i32_0 : i32, i32, i32
  }
  func.func @transform_1(%arg0: i32) -> (i32, i32) {
    %c0_i32 = arith.constant 0 : i32
    %c0_i32_0 = arith.constant 0 : i32
    %c0_i32_1 = arith.constant 0 : i32
    return %c0_i32, %c0_i32_0 : i32, i32
  }
  func.func @transform_2(%arg0: i32) -> (i32, i32) {
    %c0_i32 = arith.constant 0 : i32
    %c0_i32_0 = arith.constant 0 : i32
    %c0_i32_1 = arith.constant 0 : i32
    return %c0_i32, %c0_i32_0 : i32, i32
  }
  func.func @transform_3(%arg0: i32) -> (i32, i32) {
    %c0_i32 = arith.constant 0 : i32
    %c0_i32_0 = arith.constant 0 : i32
    %c0_i32_1 = arith.constant 0 : i32
    return %c0_i32, %c0_i32_0 : i32, i32
  }
  func.func @transform_4(%arg0: i32) -> (i32, i32) {
    %c0_i32 = arith.constant 0 : i32
    %c0_i32_0 = arith.constant 0 : i32
    %c0_i32_1 = arith.constant 0 : i32
    return %c0_i32, %c0_i32_0 : i32, i32
  }
  func.func @transform_5(%arg0: i32) -> (i32, i32) {
    %c0_i32 = arith.constant 0 : i32
    %c0_i32_0 = arith.constant 0 : i32
    %c0_i32_1 = arith.constant 0 : i32
    return %c0_i32, %c0_i32_0 : i32, i32
  }
  func.func @transform_6(%arg0: i32) -> (i32, i32) {
    %c0_i32 = arith.constant 0 : i32
    %c0_i32_0 = arith.constant 0 : i32
    return %arg0, %c0_i32 : i32, i32
  }
}

module attributes {stable_mosaic.version = 11 : i64} {
  func.func @_head_kernel(%arg0: i32, %arg1: memref<2x8x32xf32, #tpu.memory_space<vmem>>, %arg2: memref<1x32xf32, #tpu.memory_space<vmem>>, %arg3: memref<1x32xf32, #tpu.memory_space<vmem>>, %arg4: memref<1x32xf32, #tpu.memory_space<vmem>>, %arg5: memref<32x128xf32, #tpu.memory_space<vmem>>, %arg6: memref<1x128xf32, #tpu.memory_space<vmem>>, %arg7: memref<2x128xf32, #tpu.memory_space<vmem>>) attributes {dimension_semantics = [#tpu.dimension_semantics<parallel>], iteration_bounds = array<i64: 1>, scalar_prefetch = 0 : i64, scratch_operands = 0 : i64, tpu.core_type = #tpu.core_type<tc>, window_params = [{transform_indices = @transform_0, window_bounds = array<i64: 2, 8, 32>}, {pipeline_mode = #tpu.pipeline_mode<synchronous>, transform_indices = @transform_1, window_bounds = array<i64: 1, 32>}, {pipeline_mode = #tpu.pipeline_mode<synchronous>, transform_indices = @transform_2, window_bounds = array<i64: 1, 32>}, {pipeline_mode = #tpu.pipeline_mode<synchronous>, transform_indices = @transform_3, window_bounds = array<i64: 1, 32>}, {pipeline_mode = #tpu.pipeline_mode<synchronous>, transform_indices = @transform_4, window_bounds = array<i64: 32, 128>}, {pipeline_mode = #tpu.pipeline_mode<synchronous>, transform_indices = @transform_5, window_bounds = array<i64: 1, 128>}, {transform_indices = @transform_6, window_bounds = array<i64: 2, 128>}]} {
    %c0 = arith.constant 0 : index
    %c0_0 = arith.constant 0 : index
    %c0_1 = arith.constant 0 : index
    %0 = vector.load %arg1[%c0, %c0_0, %c0_1] : memref<2x8x32xf32, #tpu.memory_space<vmem>>, vector<2x8x32xf32>
    %c0_2 = arith.constant 0 : index
    %c0_3 = arith.constant 0 : index
    %1 = vector.load %arg2[%c0_2, %c0_3] : memref<1x32xf32, #tpu.memory_space<vmem>>, vector<1x32xf32>
    %2 = vector.shape_cast %1 : vector<1x32xf32> to vector<1x1x32xf32>
    %3 = vector.broadcast %2 : vector<1x1x32xf32> to vector<2x8x32xf32>
    %4 = arith.mulf %0, %3 : vector<2x8x32xf32>
    %cst = arith.constant dense<0.000000e+00> : vector<2x8xf32>
    %5 = vector.multi_reduction <add>, %4, %cst [2] : vector<2x8x32xf32> to vector<2x8xf32>
    %cst_4 = arith.constant dense<0xFF800000> : vector<2xf32>
    %6 = vector.multi_reduction <maximumf>, %5, %cst_4 [1] : vector<2x8xf32> to vector<2xf32>
    %7 = vector.shape_cast %6 : vector<2xf32> to vector<2x1xf32>
    %8 = vector.broadcast %7 : vector<2x1xf32> to vector<2x8xf32>
    %9 = arith.subf %5, %8 : vector<2x8xf32>
    %10 = math.exp %9 : vector<2x8xf32>
    %cst_5 = arith.constant dense<0.000000e+00> : vector<2xf32>
    %11 = vector.multi_reduction <add>, %10, %cst_5 [1] : vector<2x8xf32> to vector<2xf32>
    %12 = vector.shape_cast %11 : vector<2xf32> to vector<2x1xf32>
    %13 = vector.shape_cast %10 : vector<2x8xf32> to vector<2x1x8xf32>
    "tpu.trace_start"() <{level = 10 : i32, message = "bqs,bsd->bqd"}> : () -> ()
    %cst_6 = arith.constant dense<0.000000e+00> : vector<2x1x32xf32>
    %14 = tpu.matmul %13, %0, %cst_6 {dimension_numbers = #tpu.dot_dimension_numbers<[2], [1], [1], [2], [0, 0, 0, 1, 1, 2], [0], [0]>} : vector<2x1x8xf32>, vector<2x8x32xf32>, vector<2x1x32xf32> -> vector<2x1x32xf32>
    "tpu.trace_stop"() : () -> ()
    %15 = vector.shape_cast %14 : vector<2x1x32xf32> to vector<2x32xf32>
    %16 = tpu.reciprocal %12 : vector<2x1xf32> -> vector<2x1xf32>
    %17 = vector.broadcast %16 : vector<2x1xf32> to vector<2x32xf32>
    %18 = arith.mulf %15, %17 : vector<2x32xf32>
    %cst_7 = arith.constant dense<0.000000e+00> : vector<2xf32>
    %19 = vector.multi_reduction <add>, %18, %cst_7 [1] : vector<2x32xf32> to vector<2xf32>
    %20 = vector.shape_cast %19 : vector<2xf32> to vector<2x1xf32>
    %cst_8 = arith.constant 3.200000e+01 : f32
    %21 = vector.broadcast %cst_8 : f32 to vector<2x1xf32>
    %22 = arith.divf %20, %21 : vector<2x1xf32>
    %23 = vector.broadcast %22 : vector<2x1xf32> to vector<2x32xf32>
    %24 = arith.subf %18, %23 : vector<2x32xf32>
    %25 = arith.mulf %24, %24 : vector<2x32xf32>
    %cst_9 = arith.constant dense<0.000000e+00> : vector<2xf32>
    %26 = vector.multi_reduction <add>, %25, %cst_9 [1] : vector<2x32xf32> to vector<2xf32>
    %27 = vector.shape_cast %26 : vector<2xf32> to vector<2x1xf32>
    %cst_10 = arith.constant 3.200000e+01 : f32
    %28 = vector.broadcast %cst_10 : f32 to vector<2x1xf32>
    %29 = arith.divf %27, %28 : vector<2x1xf32>
    %30 = vector.broadcast %22 : vector<2x1xf32> to vector<2x32xf32>
    %31 = arith.subf %18, %30 : vector<2x32xf32>
    %cst_11 = arith.constant 9.99999974E-6 : f32
    %32 = vector.broadcast %cst_11 : f32 to vector<2x1xf32>
    %33 = arith.addf %29, %32 : vector<2x1xf32>
    %34 = math.rsqrt %33 : vector<2x1xf32>
    %35 = vector.broadcast %34 : vector<2x1xf32> to vector<2x32xf32>
    %36 = arith.mulf %31, %35 : vector<2x32xf32>
    %c0_12 = arith.constant 0 : index
    %c0_13 = arith.constant 0 : index
    %37 = vector.load %arg3[%c0_12, %c0_13] : memref<1x32xf32, #tpu.memory_space<vmem>>, vector<1x32xf32>
    %38 = vector.broadcast %37 : vector<1x32xf32> to vector<2x32xf32>
    %39 = arith.mulf %36, %38 : vector<2x32xf32>
    %c0_14 = arith.constant 0 : index
    %c0_15 = arith.constant 0 : index
    %40 = vector.load %arg4[%c0_14, %c0_15] : memref<1x32xf32, #tpu.memory_space<vmem>>, vector<1x32xf32>
    %41 = vector.broadcast %40 : vector<1x32xf32> to vector<2x32xf32>
    %42 = arith.addf %39, %41 : vector<2x32xf32>
    %c0_16 = arith.constant 0 : index
    %c0_17 = arith.constant 0 : index
    %43 = vector.load %arg5[%c0_16, %c0_17] : memref<32x128xf32, #tpu.memory_space<vmem>>, vector<32x128xf32>
    %cst_18 = arith.constant dense<0.000000e+00> : vector<2x128xf32>
    %44 = tpu.matmul %42, %43, %cst_18 {dimension_numbers = #tpu.dot_dimension_numbers<[1], [0], [0], [1], [0, 0, 1, 1], [], []>} : vector<2x32xf32>, vector<32x128xf32>, vector<2x128xf32> -> vector<2x128xf32>
    %c0_19 = arith.constant 0 : index
    %c0_20 = arith.constant 0 : index
    %45 = vector.load %arg6[%c0_19, %c0_20] : memref<1x128xf32, #tpu.memory_space<vmem>>, vector<1x128xf32>
    %46 = vector.broadcast %45 : vector<1x128xf32> to vector<2x128xf32>
    %47 = arith.addf %44, %46 : vector<2x128xf32>
    %c0_21 = arith.constant 0 : index
    %c0_22 = arith.constant 0 : index
    %48 = vector.load %arg7[%c0_21, %c0_22] : memref<2x128xf32, #tpu.memory_space<vmem>>, vector<2x128xf32>
    tpu.vector_store %arg7[%c0_21, %c0_22], %47 {strides = array<i32>} : memref<2x128xf32, #tpu.memory_space<vmem>>, vector<2x128xf32>,
    return
  }
  func.func @transform_0(%arg0: i32) -> (i32, i32, i32) {
    %c0_i32 = arith.constant 0 : i32
    %c0_i32_0 = arith.constant 0 : i32
    %c0_i32_1 = arith.constant 0 : i32
    return %arg0, %c0_i32, %c0_i32_0 : i32, i32, i32
  }
  func.func @transform_1(%arg0: i32) -> (i32, i32) {
    %c0_i32 = arith.constant 0 : i32
    %c0_i32_0 = arith.constant 0 : i32
    %c0_i32_1 = arith.constant 0 : i32
    return %c0_i32, %c0_i32_0 : i32, i32
  }
  func.func @transform_2(%arg0: i32) -> (i32, i32) {
    %c0_i32 = arith.constant 0 : i32
    %c0_i32_0 = arith.constant 0 : i32
    %c0_i32_1 = arith.constant 0 : i32
    return %c0_i32, %c0_i32_0 : i32, i32
  }
  func.func @transform_3(%arg0: i32) -> (i32, i32) {
    %c0_i32 = arith.constant 0 : i32
    %c0_i32_0 = arith.constant 0 : i32
    %c0_i32_1 = arith.constant 0 : i32
    return %c0_i32, %c0_i32_0 : i32, i32
  }
  func.func @transform_4(%arg0: i32) -> (i32, i32) {
    %c0_i32 = arith.constant 0 : i32
    %c0_i32_0 = arith.constant 0 : i32
    %c0_i32_1 = arith.constant 0 : i32
    return %c0_i32, %c0_i32_0 : i32, i32
  }
  func.func @transform_5(%arg0: i32) -> (i32, i32) {
    %c0_i32 = arith.constant 0 : i32
    %c0_i32_0 = arith.constant 0 : i32
    %c0_i32_1 = arith.constant 0 : i32
    return %c0_i32, %c0_i32_0 : i32, i32
  }
  func.func @transform_6(%arg0: i32) -> (i32, i32) {
    %c0_i32 = arith.constant 0 : i32
    %c0_i32_0 = arith.constant 0 : i32
    return %arg0, %c0_i32 : i32, i32
  }
}

</mosaic_0001>

<llo_original>
// kernel: tpu_custom_call.1
$region0: #{tpu_custom_call.1}
  #allocation0 [shape = 'u32[]', space=smem, size = 0x4, offset = 0x4, fixed_abs, tag = 'smem constant byte address 0x4 - core index']
  #allocation1 [shape = 'u32[144,128]{1,0:T(1,128)}', space=vmem, size = 0x12000, scoped, tag = 'internal scratch']
  %s0 = inlined_call_operand.hbm [shape: f32[2,8,32], index: 0, kind: input, shape index: {}]
  %s1 = inlined_call_operand.vmem [shape: f32[1,32], index: 1, kind: input, shape index: {}]
  %s2 = inlined_call_operand.vmem [shape: f32[1,32], index: 2, kind: input, shape index: {}]
  %s3 = inlined_call_operand.vmem [shape: f32[1,32], index: 3, kind: input, shape index: {}]
  %s4 = inlined_call_operand.hbm [shape: f32[32,128], index: 4, kind: input, shape index: {}]
  %s5 = inlined_call_operand.vmem [shape: f32[1,128], index: 5, kind: input, shape index: {}]
  %s6 = inlined_call_operand.hbm [shape: f32[2,128], index: 6, kind: output, shape index: {}]
  %s7 = sld [smem:[#allocation0]]
  $region42: #{tpu_custom_call.1} parent=0
    _
  %s9 = ssub.s32 1, %s7
  %s10 = scalar_select 0, %s9, %s7
  $region1: #{tpu_custom_call.1} parent=0
    #allocation2 [shape = 'u8[8192]{0}', space=vmem, size = 0x2000, scoped, tag = 'input window, operand 0, single buffered']
    #allocation3 [shape = 's32[1]{0}', space=sflag, size = 0x4, scoped, tag = 'scoped memory for tpu_custom_call.1']
    #allocation4 [shape = 's32[1]{0}', space=sflag, size = 0x4, scoped, tag = 'scoped memory for tpu_custom_call.1']
    #allocation5 [shape = 'u8[16384]{0}', space=vmem, size = 0x4000, scoped, tag = 'input window, operand 4, single buffered']
    #allocation6 [shape = 's32[1]{0}', space=sflag, size = 0x4, scoped, tag = 'scoped memory for tpu_custom_call.1']
    #allocation7 [shape = 'u8[1024]{0}', space=vmem, size = 0x400, scoped, tag = 'output window, operand 0, single buffered']
    %11 = vsyncpa [#allocation3], 0
    %12 = vsyncpa [#allocation6], 0
    %13 = vsyncpa [#allocation4], 0
    // Predicated region
    $region2: #{tpu_custom_call.1} parent=1 // pred_check
      _
    $region3: #{tpu_custom_call.1} parent=1 // pred_check_branch
      %15 = sbr.rel (0) target = $region5
    $region4: #{tpu_custom_call.1} parent=1 // pred_region
      %s17 = ssub.s32 256, 256
      %18 = vsyncadd [#allocation3], %s17
      %s19 = sshll.u32 [#allocation2], 4
      %s20 = int_to_ptr.vmem [resolvable:$true] %s19
      %25 = dma.hbm_to_vmem [thread:$0]  %s0, 256, %s20, [#allocation3], 128, 128, 8
    $region5: #{tpu_custom_call.1} parent=1 // pred_fallthru
      _
    // Predicated region
    $region6: #{tpu_custom_call.1} parent=1 // pred_check
      _
    $region7: #{tpu_custom_call.1} parent=1 // pred_check_branch
      %27 = sbr.rel (0) target = $region9
    $region8: #{tpu_custom_call.1} parent=1 // pred_region
      _
    $region9: #{tpu_custom_call.1} parent=1 // pred_fallthru
      _
    // Predicated region
    $region10: #{tpu_custom_call.1} parent=1 // pred_check
      _
    $region11: #{tpu_custom_call.1} parent=1 // pred_check_branch
      %29 = sbr.rel (0) target = $region13
    $region12: #{tpu_custom_call.1} parent=1 // pred_region
      _
    $region13: #{tpu_custom_call.1} parent=1 // pred_fallthru
      _
    // Predicated region
    $region14: #{tpu_custom_call.1} parent=1 // pred_check
      _
    $region15: #{tpu_custom_call.1} parent=1 // pred_check_branch
      %31 = sbr.rel (0) target = $region17
    $region16: #{tpu_custom_call.1} parent=1 // pred_region
      _
    $region17: #{tpu_custom_call.1} parent=1 // pred_fallthru
      _
    // Predicated region
    $region18: #{tpu_custom_call.1} parent=1 // pred_check
      _
    $region19: #{tpu_custom_call.1} parent=1 // pred_check_branch
      %33 = sbr.rel (0) target = $region21
    $region20: #{tpu_custom_call.1} parent=1 // pred_region
      %s35 = ssub.s32 512, 512
      %36 = vsyncadd [#allocation6], %s35
      %s37 = sshll.u32 [#allocation5], 4
      %s38 = int_to_ptr.vmem [resolvable:$true] %s37
      %43 = dma.hbm_to_vmem [thread:$0]  %s4, 512, %s38, [#allocation6], 128, 128, 8
    $region21: #{tpu_custom_call.1} parent=1 // pred_fallthru
      _
    // Predicated region
    $region22: #{tpu_custom_call.1} parent=1 // pred_check
      _
    $region23: #{tpu_custom_call.1} parent=1 // pred_check_branch
      %45 = sbr.rel (0) target = $region25
    $region24: #{tpu_custom_call.1} parent=1 // pred_region
      _
    $region25: #{tpu_custom_call.1} parent=1 // pred_fallthru
      _
    // Predicated region
    $region26: #{tpu_custom_call.1} parent=1 // pred_check
      _
    $region27: #{tpu_custom_call.1} parent=1 // pred_check_branch
      %47 = sbr.rel (0) target = $region29
    $region28: #{tpu_custom_call.1} parent=1 // pred_region
      %48 = dma.done [#allocation3], 256
    $region29: #{tpu_custom_call.1} parent=1 // pred_fallthru
      _
    // Predicated region
    $region30: #{tpu_custom_call.1} parent=1 // pred_check
      _
    $region31: #{tpu_custom_call.1} parent=1 // pred_check_branch
      %50 = sbr.rel (0) target = $region33
    $region32: #{tpu_custom_call.1} parent=1 // pred_region
      %51 = dma.done [#allocation6], 512
    $region33: #{tpu_custom_call.1} parent=1 // pred_fallthru
      _
    %v52 = vld [vmem:[#allocation2] sm:$0xff]
    %v53 = vld [vmem:[#allocation2 + $0x8] sm:$0xff]
    %v54 = vld [vmem:[%s1] sm:$0x1]
    %v56 = vlaneseq
    %v57 = vshrl.u32 %v56, 7
    %v58 = vsub.s32 0, %v57
    %v59 = vrot.slane %v54, %v58
    %v61 = vmul.f32 %v52, %v59
    %v62 = vmul.f32 %v53, %v59
    %vm63 = vcmask 261120
    %v64 = vsel %vm63, %v61, 0.0
    %65 = vadd.xlane.f32.xlu0 %v64
    %v66 = vpop.xlane.xlu0 %65
    %v67 = vsel %vm63, %v62, 0.0
    %68 = vadd.xlane.f32.xlu0 %v67
    %v69 = vpop.xlane.xlu0 %68
    %v72 = vlaneseq
    %v73 = vand.u32 %v72, 127
    %v74 = vlaneseq
    %v75 = vshrl.u32 %v74, 7
    %v76 = vsub.s32 %v73, %v75
    %v77 = vrot.slane %v66, %v76
    %v78 = vlaneseq
    %v79 = vshrl.u32 %v78, 7
    %v80 = vsub.s32 %v73, %v79
    %v81 = vrot.slane %v69, %v80
    %vm82 = vcmask 1041409
    %v83 = vsel %vm82, %v81, %v77
    %vm85 = vcmask 58368
    %v86 = vsel %vm85, %v83, -inf
    %87 = vmax.xlane.f32.xlu0 %v86
    %v88 = vpop.xlane.xlu0 %87
    %v90 = vlaneseq
    %v91 = vshrl.u32 %v90, 7
    %v92 = vsub.s32 0, %v91
    %v93 = vrot.slane %v88, %v92
    %v94 = vlaneseq
    %v95 = vshrl.u32 %v94, 7
    %v96 = vsub.s32 1, %v95
    %v97 = vrot.slane %v88, %v96
    %v100 = vsub.f32 %v66, %v93
    %v101 = vsub.f32 %v69, %v97
    %v102 = vmul.f32 %v100, 1.442695
    %v103 = vpow.pop %v102
    %v104 = vmul.f32 %v101, 1.442695
    %v105 = vpow.pop %v104
    %108 = vset.pattern.permute.xlu0 0
    %109 = vperm.xlu0 %108, %v103
    %v110 = vpop.permute.xlu0 %109
    %111 = vset.pattern.permute.xlu0 0
    %112 = vperm.xlu0 %111, %v105
    %v113 = vpop.permute.xlu0 %112
    %v114 = vlaneseq
    %v115 = vshrl.u32 %v114, 7
    %v116 = vsub.s32 %v73, %v115
    %v117 = vrot.slane %v110, %v116
    %v118 = vlaneseq
    %v119 = vshrl.u32 %v118, 7
    %v120 = vsub.s32 %v73, %v119
    %v121 = vrot.slane %v113, %v120
    %v122 = vsel %vm82, %v121, %v117
    %v124 = vsel %vm85, %v122, 0.0
    %125 = vadd.xlane.f32.xlu0 %v124
    %v126 = vpop.xlane.xlu0 %125
    %vm127 = vcmask 64512
    %v128 = vsel %vm127, %v117, 0
    %130 = vmatprep.subr.mxu0 0.0
    %131 = vmatpush1.msra.mxu0 %v52
    %132 = vmatprep.subr.mxu0 0.0
    %133 = vmatpush1.msra.mxu0 0.0
    %134 = vmatprep.subr.mxu0 0.0
    %135 = vmatpush1.msra.mxu0 0.0
    %136 = vmatprep.subr.mxu0 0.0
    %137 = vmatpush1.msra.mxu0 0.0
    %138 = vmatprep.subr.mxu0 0.0
    %139 = vmatpush1.msra.mxu0 0.0
    %140 = vmatprep.subr.mxu0 0.0
    %141 = vmatpush1.msra.mxu0 0.0
    %142 = vmatprep.subr.mxu0 0.0
    %143 = vmatpush1.msra.mxu0 0.0
    %144 = vmatprep.subr.mxu0 0.0
    %145 = vmatpush1.msra.mxu0 0.0
    %146 = vmatprep.subr.mxu0 0.0
    %147 = vmatpush1.msra.mxu0 0.0
    %148 = vmatprep.subr.mxu0 0.0
    %149 = vmatpush1.msra.mxu0 0.0
    %150 = vmatprep.subr.mxu0 0.0
    %151 = vmatpush1.msra.mxu0 0.0
    %152 = vmatprep.subr.mxu0 0.0
    %153 = vmatpush1.msra.mxu0 0.0
    %154 = vmatprep.subr.mxu0 0.0
    %155 = vmatpush1.msra.mxu0 0.0
    %156 = vmatprep.subr.mxu0 0.0
    %157 = vmatpush1.msra.mxu0 0.0
    %158 = vmatprep.subr.mxu0 0.0
    %159 = vmatpush1.msra.mxu0 0.0
    %160 = vmatprep.subr.mxu0 0.0
    %161 = vmatpush1.msra.mxu0 0.0
    %162 = vmatprep.subr.mxu0 0.0
    %163 = vmatpush1.msra.mxu0 0.0
    %164 = vmatprep.subr.mxu0 0.0
    %165 = vmatpush1.msra.mxu0 0.0
    %166 = vmatprep.subr.mxu0 0.0
    %167 = vmatpush1.msra.mxu0 0.0
    %168 = vmatprep.subr.mxu0 0.0
    %169 = vmatpush1.msra.mxu0 0.0
    %170 = vmatprep.subr.mxu0 0.0
    %171 = vmatpush1.msra.mxu0 0.0
    %172 = vmatprep.subr.mxu0 0.0
    %173 = vmatpush1.msra.mxu0 0.0
    %174 = vmatprep.subr.mxu0 0.0
    %175 = vmatpush1.msra.mxu0 0.0
    %176 = vmatprep.subr.mxu0 0.0
    %177 = vmatpush1.msra.mxu0 0.0
    %178 = vmatprep.subr.mxu0 0.0
    %179 = vmatpush1.msra.mxu0 0.0
    %180 = vmatprep.subr.mxu0 0.0
    %181 = vmatpush1.msra.mxu0 0.0
    %182 = vmatprep.subr.mxu0 0.0
    %183 = vmatpush1.msra.mxu0 0.0
    %184 = vmatprep.subr.mxu0 0.0
    %185 = vmatpush1.msra.mxu0 0.0
    %186 = vmatprep.subr.mxu0 0.0
    %187 = vmatpush1.msra.mxu0 0.0
    %188 = vmatprep.subr.mxu0 0.0
    %189 = vmatpush1.msra.mxu0 0.0
    %190 = vmatprep.subr.mxu0 0.0
    %191 = vmatpush1.msra.mxu0 0.0
    %192 = vmatprep.subr.mxu0 0.0
    %193 = vmatpush1.msra.mxu0 0.0
    %194 = vmatprep.mubr.f32.mxu0 0.0
    %195 = vmatmul.mubr.f32.gmra.mrb[0].mxu0 %v128
    %v196 = vpop.f32.mrb[0].mxu0
    %v197 = vadd.f32 0.0, %v196
    %v198 = vpop.f32.mrb[0].mxu0
    %199 = vdwg.mxu0
    %v200 = vsel %vm127, %v121, 0
    %202 = vmatprep.subr.mxu0 0.0
    %203 = vmatpush1.msra.mxu0 %v53
    %204 = vmatprep.subr.mxu0 0.0
    %205 = vmatpush1.msra.mxu0 0.0
    %206 = vmatprep.subr.mxu0 0.0
    %207 = vmatpush1.msra.mxu0 0.0
    %208 = vmatprep.subr.mxu0 0.0
    %209 = vmatpush1.msra.mxu0 0.0
    %210 = vmatprep.subr.mxu0 0.0
    %211 = vmatpush1.msra.mxu0 0.0
    %212 = vmatprep.subr.mxu0 0.0
    %213 = vmatpush1.msra.mxu0 0.0
    %214 = vmatprep.subr.mxu0 0.0
    %215 = vmatpush1.msra.mxu0 0.0
    %216 = vmatprep.subr.mxu0 0.0
    %217 = vmatpush1.msra.mxu0 0.0
    %218 = vmatprep.subr.mxu0 0.0
    %219 = vmatpush1.msra.mxu0 0.0
    %220 = vmatprep.subr.mxu0 0.0
    %221 = vmatpush1.msra.mxu0 0.0
    %222 = vmatprep.subr.mxu0 0.0
    %223 = vmatpush1.msra.mxu0 0.0
    %224 = vmatprep.subr.mxu0 0.0
    %225 = vmatpush1.msra.mxu0 0.0
    %226 = vmatprep.subr.mxu0 0.0
    %227 = vmatpush1.msra.mxu0 0.0
    %228 = vmatprep.subr.mxu0 0.0
    %229 = vmatpush1.msra.mxu0 0.0
    %230 = vmatprep.subr.mxu0 0.0
    %231 = vmatpush1.msra.mxu0 0.0
    %232 = vmatprep.subr.mxu0 0.0
    %233 = vmatpush1.msra.mxu0 0.0
    %234 = vmatprep.subr.mxu0 0.0
    %235 = vmatpush1.msra.mxu0 0.0
    %236 = vmatprep.subr.mxu0 0.0
    %237 = vmatpush1.msra.mxu0 0.0
    %238 = vmatprep.subr.mxu0 0.0
    %239 = vmatpush1.msra.mxu0 0.0
    %240 = vmatprep.subr.mxu0 0.0
    %241 = vmatpush1.msra.mxu0 0.0
    %242 = vmatprep.subr.mxu0 0.0
    %243 = vmatpush1.msra.mxu0 0.0
    %244 = vmatprep.subr.mxu0 0.0
    %245 = vmatpush1.msra.mxu0 0.0
    %246 = vmatprep.subr.mxu0 0.0
    %247 = vmatpush1.msra.mxu0 0.0
    %248 = vmatprep.subr.mxu0 0.0
    %249 = vmatpush1.msra.mxu0 0.0
    %250 = vmatprep.subr.mxu0 0.0
    %251 = vmatpush1.msra.mxu0 0.0
    %252 = vmatprep.subr.mxu0 0.0
    %253 = vmatpush1.msra.mxu0 0.0
    %254 = vmatprep.subr.mxu0 0.0
    %255 = vmatpush1.msra.mxu0 0.0
    %256 = vmatprep.subr.mxu0 0.0
    %257 = vmatpush1.msra.mxu0 0.0
    %258 = vmatprep.subr.mxu0 0.0
    %259 = vmatpush1.msra.mxu0 0.0
    %260 = vmatprep.subr.mxu0 0.0
    %261 = vmatpush1.msra.mxu0 0.0
    %262 = vmatprep.subr.mxu0 0.0
    %263 = vmatpush1.msra.mxu0 0.0
    %264 = vmatprep.subr.mxu0 0.0
    %265 = vmatpush1.msra.mxu0 0.0
    %266 = vmatprep.mubr.f32.mxu0 0.0
    %267 = vmatmul.mubr.f32.gmra.mrb[0].mxu0 %v200
    %v268 = vpop.f32.mrb[0].mxu0
    %v269 = vadd.f32 0.0, %v268
    %v270 = vpop.f32.mrb[0].mxu0
    %271 = vdwg.mxu0
    %v272 = vrcp.pop %v126
    %v274 = vrot.slane %v272, 1
    %v277 = vmul.f32 %v197, %v272
    %v278 = vmul.f32 %v269, %v274
    %v281 = vrot.slane %v278, 7
    %v282 = vsel %vm82, %v281, %v277
    %vm284 = vcmask 254976
    %v285 = vsel %vm284, %v282, 0.0
    %286 = vadd.xlane.f32.xlu0 %v285
    %v287 = vpop.xlane.xlu0 %286
    %v288 = vrcp.pop 32.0
    %v289 = vmul.f32 %v287, %v288
    %v291 = vrot.slane %v289, 1
    %v294 = vsub.f32 %v277, %v289
    %v295 = vsub.f32 %v278, %v291
    %v296 = vmul.f32 %v294, %v294
    %v297 = vmul.f32 %v295, %v295
    %v300 = vrot.slane %v297, 7
    %v301 = vsel %vm82, %v300, %v296
    %v303 = vsel %vm284, %v301, 0.0
    %304 = vadd.xlane.f32.xlu0 %v303
    %v305 = vpop.xlane.xlu0 %304
    %v306 = vmul.f32 %v305, %v288
    %v307 = vadd.f32 %v306, 1e-05
    %v308 = vrsqrt.pop %v307
    %v310 = vrot.slane %v308, 1
    %v313 = vmul.f32 %v294, %v308
    %v314 = vmul.f32 %v295, %v310
    %v315 = vld [vmem:[%s2] sm:$0x1]
    %v317 = vlaneseq
    %v318 = vshrl.u32 %v317, 7
    %v319 = vsub.s32 0, %v318
    %v320 = vrot.slane %v315, %v319
    %v322 = vmul.f32 %v313, %v320
    %v323 = vmul.f32 %v314, %v320
    %v324 = vld [vmem:[%s3] sm:$0x1]
    %v326 = vlaneseq
    %v327 = vshrl.u32 %v326, 7
    %v328 = vsub.s32 0, %v327
    %v329 = vrot.slane %v324, %v328
    %v331 = vadd.f32 %v322, %v329
    %v332 = vadd.f32 %v323, %v329
    %v333 = vld [vmem:[#allocation5] sm:$0xff]
    %v334 = vld [vmem:[#allocation5 + $0x8] sm:$0xff]
    %v335 = vld [vmem:[#allocation5 + $0x10] sm:$0xff]
    %v336 = vld [vmem:[#allocation5 + $0x18] sm:$0xff]
    %v337 = vld [vmem:[%s5] sm:$0x1]
    %v339 = vlaneseq
    %v340 = vshrl.u32 %v339, 7
    %v341 = vsub.s32 0, %v340
    %v342 = vrot.slane %v337, %v341
    %v346 = vrot.slane %v332, 7
    %v347 = vsel %vm82, %v346, %v331
    %v348 = vsel %vm63, %v347, 0
    %350 = vmatprep.subr.mxu0 0.0
    %351 = vmatpush1.msra.mxu0 %v333
    %352 = vmatprep.subr.mxu0 0.0
    %353 = vmatpush1.msra.mxu0 %v334
    %354 = vmatprep.subr.mxu0 0.0
    %355 = vmatpush1.msra.mxu0 %v335
    %356 = vmatprep.subr.mxu0 0.0
    %357 = vmatpush1.msra.mxu0 %v336
    %358 = vmatprep.subr.mxu0 0.0
    %359 = vmatpush1.msra.mxu0 0.0
    %360 = vmatprep.subr.mxu0 0.0
    %361 = vmatpush1.msra.mxu0 0.0
    %362 = vmatprep.subr.mxu0 0.0
    %363 = vmatpush1.msra.mxu0 0.0
    %364 = vmatprep.subr.mxu0 0.0
    %365 = vmatpush1.msra.mxu0 0.0
    %366 = vmatprep.subr.mxu0 0.0
    %367 = vmatpush1.msra.mxu0 0.0
    %368 = vmatprep.subr.mxu0 0.0
    %369 = vmatpush1.msra.mxu0 0.0
    %370 = vmatprep.subr.mxu0 0.0
    %371 = vmatpush1.msra.mxu0 0.0
    %372 = vmatprep.subr.mxu0 0.0
    %373 = vmatpush1.msra.mxu0 0.0
    %374 = vmatprep.subr.mxu0 0.0
    %375 = vmatpush1.msra.mxu0 0.0
    %376 = vmatprep.subr.mxu0 0.0
    %377 = vmatpush1.msra.mxu0 0.0
    %378 = vmatprep.subr.mxu0 0.0
    %379 = vmatpush1.msra.mxu0 0.0
    %380 = vmatprep.subr.mxu0 0.0
    %381 = vmatpush1.msra.mxu0 0.0
    %382 = vmatprep.subr.mxu0 0.0
    %383 = vmatpush1.msra.mxu0 0.0
    %384 = vmatprep.subr.mxu0 0.0
    %385 = vmatpush1.msra.mxu0 0.0
    %386 = vmatprep.subr.mxu0 0.0
    %387 = vmatpush1.msra.mxu0 0.0
    %388 = vmatprep.subr.mxu0 0.0
    %389 = vmatpush1.msra.mxu0 0.0
    %390 = vmatprep.subr.mxu0 0.0
    %391 = vmatpush1.msra.mxu0 0.0
    %392 = vmatprep.subr.mxu0 0.0
    %393 = vmatpush1.msra.mxu0 0.0
    %394 = vmatprep.subr.mxu0 0.0
    %395 = vmatpush1.msra.mxu0 0.0
    %396 = vmatprep.subr.mxu0 0.0
    %397 = vmatpush1.msra.mxu0 0.0
    %398 = vmatprep.subr.mxu0 0.0
    %399 = vmatpush1.msra.mxu0 0.0
    %400 = vmatprep.subr.mxu0 0.0
    %401 = vmatpush1.msra.mxu0 0.0
    %402 = vmatprep.subr.mxu0 0.0
    %403 = vmatpush1.msra.mxu0 0.0
    %404 = vmatprep.subr.mxu0 0.0
    %405 = vmatpush1.msra.mxu0 0.0
    %406 = vmatprep.subr.mxu0 0.0
    %407 = vmatpush1.msra.mxu0 0.0
    %408 = vmatprep.subr.mxu0 0.0
    %409 = vmatpush1.msra.mxu0 0.0
    %410 = vmatprep.subr.mxu0 0.0
    %411 = vmatpush1.msra.mxu0 0.0
    %412 = vmatprep.subr.mxu0 0.0
    %413 = vmatpush1.msra.mxu0 0.0
    %414 = vmatprep.mubr.f32.mxu0 0.0
    %415 = vmatmul.mubr.f32.gmra.mrb[0].mxu0 %v348
    %v416 = vpop.f32.mrb[0].mxu0
    %v417 = vadd.f32 %v342, %v416
    %v418 = vpop.f32.mrb[0].mxu0
    %419 = vdwg.mxu0
    %420 = vst [vmem:[#allocation7] sm:$0x3] %v417
    // Predicated region
    $region34: #{tpu_custom_call.1} parent=1 // pred_check
      _
    $region35: #{tpu_custom_call.1} parent=1 // pred_check_branch
      %422 = sbr.rel (0) target = $region37
    $region36: #{tpu_custom_call.1} parent=1 // pred_region
      %s424 = ssub.s32 32, 32
      %425 = vsyncadd [#allocation4], %s424
      %s427 = sshll.u32 [#allocation7], 4
      %s428 = int_to_ptr.vmem [resolvable:$true] %s427
      %430 = dma.vmem_to_hbm [thread:$0]  %s428, 32, %s6, [#allocation4]
    $region37: #{tpu_custom_call.1} parent=1 // pred_fallthru
      _
    // Predicated region
    $region38: #{tpu_custom_call.1} parent=1 // pred_check
      _
    $region39: #{tpu_custom_call.1} parent=1 // pred_check_branch
      %432 = sbr.rel (0) target = $region41
    $region40: #{tpu_custom_call.1} parent=1 // pred_region
      %433 = dma.done [#allocation4], 32
    $region41: #{tpu_custom_call.1} parent=1 // pred_fallthru
      _
    %434 = vsyncpa [#allocation3], 1
    %435 = vsyncpa [#allocation6], 1
    %436 = vsyncpa [#allocation4], 1

// kernel: tpu_custom_call.1
$region0: #{tpu_custom_call.1}
  #allocation0 [shape = 'u32[]', space=smem, size = 0x4, offset = 0x4, fixed_abs, tag = 'smem constant byte address 0x4 - core index']
  #allocation1 [shape = 'u32[144,128]{1,0:T(1,128)}', space=vmem, size = 0x12000, scoped, tag = 'internal scratch']
  %s0 = inlined_call_operand.hbm [shape: f32[2,8,32], index: 0, kind: input, shape index: {}]
  %s1 = inlined_call_operand.vmem [shape: f32[1,32], index: 1, kind: input, shape index: {}]
  %s2 = inlined_call_operand.vmem [shape: f32[1,32], index: 2, kind: input, shape index: {}]
  %s3 = inlined_call_operand.vmem [shape: f32[1,32], index: 3, kind: input, shape index: {}]
  %s4 = inlined_call_operand.hbm [shape: f32[32,128], index: 4, kind: input, shape index: {}]
  %s5 = inlined_call_operand.vmem [shape: f32[1,128], index: 5, kind: input, shape index: {}]
  %s6 = inlined_call_operand.hbm [shape: f32[2,128], index: 6, kind: output, shape index: {}]
  %s7 = sld [smem:[#allocation0]]
  $region42: #{tpu_custom_call.1} parent=0
    _
  %s9 = ssub.s32 1, %s7
  %s10 = scalar_select 0, %s9, %s7
  $region1: #{tpu_custom_call.1} parent=0
    #allocation2 [shape = 'u8[8192]{0}', space=vmem, size = 0x2000, scoped, tag = 'input window, operand 0, single buffered']
    #allocation3 [shape = 's32[1]{0}', space=sflag, size = 0x4, scoped, tag = 'scoped memory for tpu_custom_call.1']
    #allocation4 [shape = 's32[1]{0}', space=sflag, size = 0x4, scoped, tag = 'scoped memory for tpu_custom_call.1']
    #allocation5 [shape = 'u8[16384]{0}', space=vmem, size = 0x4000, scoped, tag = 'input window, operand 4, single buffered']
    #allocation6 [shape = 's32[1]{0}', space=sflag, size = 0x4, scoped, tag = 'scoped memory for tpu_custom_call.1']
    #allocation7 [shape = 'u8[1024]{0}', space=vmem, size = 0x400, scoped, tag = 'output window, operand 0, single buffered']
    %11 = vsyncpa [#allocation3], 0
    %12 = vsyncpa [#allocation6], 0
    %13 = vsyncpa [#allocation4], 0
    // Predicated region
    $region2: #{tpu_custom_call.1} parent=1 // pred_check
      _
    $region3: #{tpu_custom_call.1} parent=1 // pred_check_branch
      %15 = sbr.rel (0) target = $region5
    $region4: #{tpu_custom_call.1} parent=1 // pred_region
      %s17 = ssub.s32 256, 256
      %18 = vsyncadd [#allocation3], %s17
      %s19 = sshll.u32 [#allocation2], 4
      %s20 = int_to_ptr.vmem [resolvable:$true] %s19
      %25 = dma.hbm_to_vmem [thread:$0]  %s0, 256, %s20, [#allocation3], 128, 128, 8
    $region5: #{tpu_custom_call.1} parent=1 // pred_fallthru
      _
    // Predicated region
    $region6: #{tpu_custom_call.1} parent=1 // pred_check
      _
    $region7: #{tpu_custom_call.1} parent=1 // pred_check_branch
      %27 = sbr.rel (0) target = $region9
    $region8: #{tpu_custom_call.1} parent=1 // pred_region
      _
    $region9: #{tpu_custom_call.1} parent=1 // pred_fallthru
      _
    // Predicated region
    $region10: #{tpu_custom_call.1} parent=1 // pred_check
      _
    $region11: #{tpu_custom_call.1} parent=1 // pred_check_branch
      %29 = sbr.rel (0) target = $region13
    $region12: #{tpu_custom_call.1} parent=1 // pred_region
      _
    $region13: #{tpu_custom_call.1} parent=1 // pred_fallthru
      _
    // Predicated region
    $region14: #{tpu_custom_call.1} parent=1 // pred_check
      _
    $region15: #{tpu_custom_call.1} parent=1 // pred_check_branch
      %31 = sbr.rel (0) target = $region17
    $region16: #{tpu_custom_call.1} parent=1 // pred_region
      _
    $region17: #{tpu_custom_call.1} parent=1 // pred_fallthru
      _
    // Predicated region
    $region18: #{tpu_custom_call.1} parent=1 // pred_check
      _
    $region19: #{tpu_custom_call.1} parent=1 // pred_check_branch
      %33 = sbr.rel (0) target = $region21
    $region20: #{tpu_custom_call.1} parent=1 // pred_region
      %s35 = ssub.s32 512, 512
      %36 = vsyncadd [#allocation6], %s35
      %s37 = sshll.u32 [#allocation5], 4
      %s38 = int_to_ptr.vmem [resolvable:$true] %s37
      %43 = dma.hbm_to_vmem [thread:$0]  %s4, 512, %s38, [#allocation6], 128, 128, 8
    $region21: #{tpu_custom_call.1} parent=1 // pred_fallthru
      _
    // Predicated region
    $region22: #{tpu_custom_call.1} parent=1 // pred_check
      _
    $region23: #{tpu_custom_call.1} parent=1 // pred_check_branch
      %45 = sbr.rel (0) target = $region25
    $region24: #{tpu_custom_call.1} parent=1 // pred_region
      _
    $region25: #{tpu_custom_call.1} parent=1 // pred_fallthru
      _
    // Predicated region
    $region26: #{tpu_custom_call.1} parent=1 // pred_check
      _
    $region27: #{tpu_custom_call.1} parent=1 // pred_check_branch
      %47 = sbr.rel (0) target = $region29
    $region28: #{tpu_custom_call.1} parent=1 // pred_region
      %48 = dma.done [#allocation3], 256
    $region29: #{tpu_custom_call.1} parent=1 // pred_fallthru
      _
    // Predicated region
    $region30: #{tpu_custom_call.1} parent=1 // pred_check
      _
    $region31: #{tpu_custom_call.1} parent=1 // pred_check_branch
      %50 = sbr.rel (0) target = $region33
    $region32: #{tpu_custom_call.1} parent=1 // pred_region
      %51 = dma.done [#allocation6], 512
    $region33: #{tpu_custom_call.1} parent=1 // pred_fallthru
      _
    %v52 = vld [vmem:[#allocation2] sm:$0xff]
    %v53 = vld [vmem:[#allocation2 + $0x8] sm:$0xff]
    %v54 = vld [vmem:[%s1] sm:$0x1]
    %v56 = vlaneseq
    %v57 = vshrl.u32 %v56, 7
    %v58 = vsub.s32 0, %v57
    %v59 = vrot.slane %v54, %v58
    %v61 = vmul.f32 %v52, %v59
    %v62 = vmul.f32 %v53, %v59
    %vm63 = vcmask 261120
    %v64 = vsel %vm63, %v61, 0.0
    %65 = vadd.xlane.f32.xlu0 %v64
    %v66 = vpop.xlane.xlu0 %65
    %v67 = vsel %vm63, %v62, 0.0
    %68 = vadd.xlane.f32.xlu0 %v67
    %v69 = vpop.xlane.xlu0 %68
    %v72 = vlaneseq
    %v73 = vand.u32 %v72, 127
    %v74 = vlaneseq
    %v75 = vshrl.u32 %v74, 7
    %v76 = vsub.s32 %v73, %v75
    %v77 = vrot.slane %v66, %v76
    %v78 = vlaneseq
    %v79 = vshrl.u32 %v78, 7
    %v80 = vsub.s32 %v73, %v79
    %v81 = vrot.slane %v69, %v80
    %vm82 = vcmask 1041409
    %v83 = vsel %vm82, %v81, %v77
    %vm85 = vcmask 58368
    %v86 = vsel %vm85, %v83, -inf
    %87 = vmax.xlane.f32.xlu0 %v86
    %v88 = vpop.xlane.xlu0 %87
    %v90 = vlaneseq
    %v91 = vshrl.u32 %v90, 7
    %v92 = vsub.s32 0, %v91
    %v93 = vrot.slane %v88, %v92
    %v94 = vlaneseq
    %v95 = vshrl.u32 %v94, 7
    %v96 = vsub.s32 1, %v95
    %v97 = vrot.slane %v88, %v96
    %v100 = vsub.f32 %v66, %v93
    %v101 = vsub.f32 %v69, %v97
    %v102 = vmul.f32 %v100, 1.442695
    %v103 = vpow.pop %v102
    %v104 = vmul.f32 %v101, 1.442695
    %v105 = vpow.pop %v104
    %108 = vset.pattern.permute.xlu0 0
    %109 = vperm.xlu0 %108, %v103
    %v110 = vpop.permute.xlu0 %109
    %111 = vset.pattern.permute.xlu0 0
    %112 = vperm.xlu0 %111, %v105
    %v113 = vpop.permute.xlu0 %112
    %v114 = vlaneseq
    %v115 = vshrl.u32 %v114, 7
    %v116 = vsub.s32 %v73, %v115
    %v117 = vrot.slane %v110, %v116
    %v118 = vlaneseq
    %v119 = vshrl.u32 %v118, 7
    %v120 = vsub.s32 %v73, %v119
    %v121 = vrot.slane %v113, %v120
    %v122 = vsel %vm82, %v121, %v117
    %v124 = vsel %vm85, %v122, 0.0
    %125 = vadd.xlane.f32.xlu0 %v124
    %v126 = vpop.xlane.xlu0 %125
    %vm127 = vcmask 64512
    %v128 = vsel %vm127, %v117, 0
    %130 = vmatprep.subr.mxu0 0.0
    %131 = vmatpush1.msra.mxu0 %v52
    %132 = vmatprep.subr.mxu0 0.0
    %133 = vmatpush1.msra.mxu0 0.0
    %134 = vmatprep.subr.mxu0 0.0
    %135 = vmatpush1.msra.mxu0 0.0
    %136 = vmatprep.subr.mxu0 0.0
    %137 = vmatpush1.msra.mxu0 0.0
    %138 = vmatprep.subr.mxu0 0.0
    %139 = vmatpush1.msra.mxu0 0.0
    %140 = vmatprep.subr.mxu0 0.0
    %141 = vmatpush1.msra.mxu0 0.0
    %142 = vmatprep.subr.mxu0 0.0
    %143 = vmatpush1.msra.mxu0 0.0
    %144 = vmatprep.subr.mxu0 0.0
    %145 = vmatpush1.msra.mxu0 0.0
    %146 = vmatprep.subr.mxu0 0.0
    %147 = vmatpush1.msra.mxu0 0.0
    %148 = vmatprep.subr.mxu0 0.0
    %149 = vmatpush1.msra.mxu0 0.0
    %150 = vmatprep.subr.mxu0 0.0
    %151 = vmatpush1.msra.mxu0 0.0
    %152 = vmatprep.subr.mxu0 0.0
    %153 = vmatpush1.msra.mxu0 0.0
    %154 = vmatprep.subr.mxu0 0.0
    %155 = vmatpush1.msra.mxu0 0.0
    %156 = vmatprep.subr.mxu0 0.0
    %157 = vmatpush1.msra.mxu0 0.0
    %158 = vmatprep.subr.mxu0 0.0
    %159 = vmatpush1.msra.mxu0 0.0
    %160 = vmatprep.subr.mxu0 0.0
    %161 = vmatpush1.msra.mxu0 0.0
    %162 = vmatprep.subr.mxu0 0.0
    %163 = vmatpush1.msra.mxu0 0.0
    %164 = vmatprep.subr.mxu0 0.0
    %165 = vmatpush1.msra.mxu0 0.0
    %166 = vmatprep.subr.mxu0 0.0
    %167 = vmatpush1.msra.mxu0 0.0
    %168 = vmatprep.subr.mxu0 0.0
    %169 = vmatpush1.msra.mxu0 0.0
    %170 = vmatprep.subr.mxu0 0.0
    %171 = vmatpush1.msra.mxu0 0.0
    %172 = vmatprep.subr.mxu0 0.0
    %173 = vmatpush1.msra.mxu0 0.0
    %174 = vmatprep.subr.mxu0 0.0
    %175 = vmatpush1.msra.mxu0 0.0
    %176 = vmatprep.subr.mxu0 0.0
    %177 = vmatpush1.msra.mxu0 0.0
    %178 = vmatprep.subr.mxu0 0.0
    %179 = vmatpush1.msra.mxu0 0.0
    %180 = vmatprep.subr.mxu0 0.0
    %181 = vmatpush1.msra.mxu0 0.0
    %182 = vmatprep.subr.mxu0 0.0
    %183 = vmatpush1.msra.mxu0 0.0
    %184 = vmatprep.subr.mxu0 0.0
    %185 = vmatpush1.msra.mxu0 0.0
    %186 = vmatprep.subr.mxu0 0.0
    %187 = vmatpush1.msra.mxu0 0.0
    %188 = vmatprep.subr.mxu0 0.0
    %189 = vmatpush1.msra.mxu0 0.0
    %190 = vmatprep.subr.mxu0 0.0
    %191 = vmatpush1.msra.mxu0 0.0
    %192 = vmatprep.subr.mxu0 0.0
    %193 = vmatpush1.msra.mxu0 0.0
    %194 = vmatprep.mubr.f32.mxu0 0.0
    %195 = vmatmul.mubr.f32.gmra.mrb[0].mxu0 %v128
    %v196 = vpop.f32.mrb[0].mxu0
    %v197 = vadd.f32 0.0, %v196
    %v198 = vpop.f32.mrb[0].mxu0
    %199 = vdwg.mxu0
    %v200 = vsel %vm127, %v121, 0
    %202 = vmatprep.subr.mxu0 0.0
    %203 = vmatpush1.msra.mxu0 %v53
    %204 = vmatprep.subr.mxu0 0.0
    %205 = vmatpush1.msra.mxu0 0.0
    %206 = vmatprep.subr.mxu0 0.0
    %207 = vmatpush1.msra.mxu0 0.0
    %208 = vmatprep.subr.mxu0 0.0
    %209 = vmatpush1.msra.mxu0 0.0
    %210 = vmatprep.subr.mxu0 0.0
    %211 = vmatpush1.msra.mxu0 0.0
    %212 = vmatprep.subr.mxu0 0.0
    %213 = vmatpush1.msra.mxu0 0.0
    %214 = vmatprep.subr.mxu0 0.0
    %215 = vmatpush1.msra.mxu0 0.0
    %216 = vmatprep.subr.mxu0 0.0
    %217 = vmatpush1.msra.mxu0 0.0
    %218 = vmatprep.subr.mxu0 0.0
    %219 = vmatpush1.msra.mxu0 0.0
    %220 = vmatprep.subr.mxu0 0.0
    %221 = vmatpush1.msra.mxu0 0.0
    %222 = vmatprep.subr.mxu0 0.0
    %223 = vmatpush1.msra.mxu0 0.0
    %224 = vmatprep.subr.mxu0 0.0
    %225 = vmatpush1.msra.mxu0 0.0
    %226 = vmatprep.subr.mxu0 0.0
    %227 = vmatpush1.msra.mxu0 0.0
    %228 = vmatprep.subr.mxu0 0.0
    %229 = vmatpush1.msra.mxu0 0.0
    %230 = vmatprep.subr.mxu0 0.0
    %231 = vmatpush1.msra.mxu0 0.0
    %232 = vmatprep.subr.mxu0 0.0
    %233 = vmatpush1.msra.mxu0 0.0
    %234 = vmatprep.subr.mxu0 0.0
    %235 = vmatpush1.msra.mxu0 0.0
    %236 = vmatprep.subr.mxu0 0.0
    %237 = vmatpush1.msra.mxu0 0.0
    %238 = vmatprep.subr.mxu0 0.0
    %239 = vmatpush1.msra.mxu0 0.0
    %240 = vmatprep.subr.mxu0 0.0
    %241 = vmatpush1.msra.mxu0 0.0
    %242 = vmatprep.subr.mxu0 0.0
    %243 = vmatpush1.msra.mxu0 0.0
    %244 = vmatprep.subr.mxu0 0.0
    %245 = vmatpush1.msra.mxu0 0.0
    %246 = vmatprep.subr.mxu0 0.0
    %247 = vmatpush1.msra.mxu0 0.0
    %248 = vmatprep.subr.mxu0 0.0
    %249 = vmatpush1.msra.mxu0 0.0
    %250 = vmatprep.subr.mxu0 0.0
    %251 = vmatpush1.msra.mxu0 0.0
    %252 = vmatprep.subr.mxu0 0.0
    %253 = vmatpush1.msra.mxu0 0.0
    %254 = vmatprep.subr.mxu0 0.0
    %255 = vmatpush1.msra.mxu0 0.0
    %256 = vmatprep.subr.mxu0 0.0
    %257 = vmatpush1.msra.mxu0 0.0
    %258 = vmatprep.subr.mxu0 0.0
    %259 = vmatpush1.msra.mxu0 0.0
    %260 = vmatprep.subr.mxu0 0.0
    %261 = vmatpush1.msra.mxu0 0.0
    %262 = vmatprep.subr.mxu0 0.0
    %263 = vmatpush1.msra.mxu0 0.0
    %264 = vmatprep.subr.mxu0 0.0
    %265 = vmatpush1.msra.mxu0 0.0
    %266 = vmatprep.mubr.f32.mxu0 0.0
    %267 = vmatmul.mubr.f32.gmra.mrb[0].mxu0 %v200
    %v268 = vpop.f32.mrb[0].mxu0
    %v269 = vadd.f32 0.0, %v268
    %v270 = vpop.f32.mrb[0].mxu0
    %271 = vdwg.mxu0
    %v272 = vrcp.pop %v126
    %v274 = vrot.slane %v272, 1
    %v277 = vmul.f32 %v197, %v272
    %v278 = vmul.f32 %v269, %v274
    %v281 = vrot.slane %v278, 7
    %v282 = vsel %vm82, %v281, %v277
    %vm284 = vcmask 254976
    %v285 = vsel %vm284, %v282, 0.0
    %286 = vadd.xlane.f32.xlu0 %v285
    %v287 = vpop.xlane.xlu0 %286
    %v288 = vrcp.pop 32.0
    %v289 = vmul.f32 %v287, %v288
    %v291 = vrot.slane %v289, 1
    %v294 = vsub.f32 %v277, %v289
    %v295 = vsub.f32 %v278, %v291
    %v296 = vmul.f32 %v294, %v294
    %v297 = vmul.f32 %v295, %v295
    %v300 = vrot.slane %v297, 7
    %v301 = vsel %vm82, %v300, %v296
    %v303 = vsel %vm284, %v301, 0.0
    %304 = vadd.xlane.f32.xlu0 %v303
    %v305 = vpop.xlane.xlu0 %304
    %v306 = vmul.f32 %v305, %v288
    %v307 = vadd.f32 %v306, 1e-05
    %v308 = vrsqrt.pop %v307
    %v310 = vrot.slane %v308, 1
    %v313 = vmul.f32 %v294, %v308
    %v314 = vmul.f32 %v295, %v310
    %v315 = vld [vmem:[%s2] sm:$0x1]
    %v317 = vlaneseq
    %v318 = vshrl.u32 %v317, 7
    %v319 = vsub.s32 0, %v318
    %v320 = vrot.slane %v315, %v319
    %v322 = vmul.f32 %v313, %v320
    %v323 = vmul.f32 %v314, %v320
    %v324 = vld [vmem:[%s3] sm:$0x1]
    %v326 = vlaneseq
    %v327 = vshrl.u32 %v326, 7
    %v328 = vsub.s32 0, %v327
    %v329 = vrot.slane %v324, %v328
    %v331 = vadd.f32 %v322, %v329
    %v332 = vadd.f32 %v323, %v329
    %v333 = vld [vmem:[#allocation5] sm:$0xff]
    %v334 = vld [vmem:[#allocation5 + $0x8] sm:$0xff]
    %v335 = vld [vmem:[#allocation5 + $0x10] sm:$0xff]
    %v336 = vld [vmem:[#allocation5 + $0x18] sm:$0xff]
    %v337 = vld [vmem:[%s5] sm:$0x1]
    %v339 = vlaneseq
    %v340 = vshrl.u32 %v339, 7
    %v341 = vsub.s32 0, %v340
    %v342 = vrot.slane %v337, %v341
    %v346 = vrot.slane %v332, 7
    %v347 = vsel %vm82, %v346, %v331
    %v348 = vsel %vm63, %v347, 0
    %350 = vmatprep.subr.mxu0 0.0
    %351 = vmatpush1.msra.mxu0 %v333
    %352 = vmatprep.subr.mxu0 0.0
    %353 = vmatpush1.msra.mxu0 %v334
    %354 = vmatprep.subr.mxu0 0.0
    %355 = vmatpush1.msra.mxu0 %v335
    %356 = vmatprep.subr.mxu0 0.0
    %357 = vmatpush1.msra.mxu0 %v336
    %358 = vmatprep.subr.mxu0 0.0
    %359 = vmatpush1.msra.mxu0 0.0
    %360 = vmatprep.subr.mxu0 0.0
    %361 = vmatpush1.msra.mxu0 0.0
    %362 = vmatprep.subr.mxu0 0.0
    %363 = vmatpush1.msra.mxu0 0.0
    %364 = vmatprep.subr.mxu0 0.0
    %365 = vmatpush1.msra.mxu0 0.0
    %366 = vmatprep.subr.mxu0 0.0
    %367 = vmatpush1.msra.mxu0 0.0
    %368 = vmatprep.subr.mxu0 0.0
    %369 = vmatpush1.msra.mxu0 0.0
    %370 = vmatprep.subr.mxu0 0.0
    %371 = vmatpush1.msra.mxu0 0.0
    %372 = vmatprep.subr.mxu0 0.0
    %373 = vmatpush1.msra.mxu0 0.0
    %374 = vmatprep.subr.mxu0 0.0
    %375 = vmatpush1.msra.mxu0 0.0
    %376 = vmatprep.subr.mxu0 0.0
    %377 = vmatpush1.msra.mxu0 0.0
    %378 = vmatprep.subr.mxu0 0.0
    %379 = vmatpush1.msra.mxu0 0.0
    %380 = vmatprep.subr.mxu0 0.0
    %381 = vmatpush1.msra.mxu0 0.0
    %382 = vmatprep.subr.mxu0 0.0
    %383 = vmatpush1.msra.mxu0 0.0
    %384 = vmatprep.subr.mxu0 0.0
    %385 = vmatpush1.msra.mxu0 0.0
    %386 = vmatprep.subr.mxu0 0.0
    %387 = vmatpush1.msra.mxu0 0.0
    %388 = vmatprep.subr.mxu0 0.0
    %389 = vmatpush1.msra.mxu0 0.0
    %390 = vmatprep.subr.mxu0 0.0
    %391 = vmatpush1.msra.mxu0 0.0
    %392 = vmatprep.subr.mxu0 0.0
    %393 = vmatpush1.msra.mxu0 0.0
    %394 = vmatprep.subr.mxu0 0.0
    %395 = vmatpush1.msra.mxu0 0.0
    %396 = vmatprep.subr.mxu0 0.0
    %397 = vmatpush1.msra.mxu0 0.0
    %398 = vmatprep.subr.mxu0 0.0
    %399 = vmatpush1.msra.mxu0 0.0
    %400 = vmatprep.subr.mxu0 0.0
    %401 = vmatpush1.msra.mxu0 0.0
    %402 = vmatprep.subr.mxu0 0.0
    %403 = vmatpush1.msra.mxu0 0.0
    %404 = vmatprep.subr.mxu0 0.0
    %405 = vmatpush1.msra.mxu0 0.0
    %406 = vmatprep.subr.mxu0 0.0
    %407 = vmatpush1.msra.mxu0 0.0
    %408 = vmatprep.subr.mxu0 0.0
    %409 = vmatpush1.msra.mxu0 0.0
    %410 = vmatprep.subr.mxu0 0.0
    %411 = vmatpush1.msra.mxu0 0.0
    %412 = vmatprep.subr.mxu0 0.0
    %413 = vmatpush1.msra.mxu0 0.0
    %414 = vmatprep.mubr.f32.mxu0 0.0
    %415 = vmatmul.mubr.f32.gmra.mrb[0].mxu0 %v348
    %v416 = vpop.f32.mrb[0].mxu0
    %v417 = vadd.f32 %v342, %v416
    %v418 = vpop.f32.mrb[0].mxu0
    %419 = vdwg.mxu0
    %420 = vst [vmem:[#allocation7] sm:$0x3] %v417
    // Predicated region
    $region34: #{tpu_custom_call.1} parent=1 // pred_check
      _
    $region35: #{tpu_custom_call.1} parent=1 // pred_check_branch
      %422 = sbr.rel (0) target = $region37
    $region36: #{tpu_custom_call.1} parent=1 // pred_region
      %s424 = ssub.s32 32, 32
      %425 = vsyncadd [#allocation4], %s424
      %s427 = sshll.u32 [#allocation7], 4
      %s428 = int_to_ptr.vmem [resolvable:$true] %s427
      %430 = dma.vmem_to_hbm [thread:$0]  %s428, 32, %s6, [#allocation4]
    $region37: #{tpu_custom_call.1} parent=1 // pred_fallthru
      _
    // Predicated region
    $region38: #{tpu_custom_call.1} parent=1 // pred_check
      _
    $region39: #{tpu_custom_call.1} parent=1 // pred_check_branch
      %432 = sbr.rel (0) target = $region41
    $region40: #{tpu_custom_call.1} parent=1 // pred_region
      %433 = dma.done [#allocation4], 32
    $region41: #{tpu_custom_call.1} parent=1 // pred_fallthru
      _
    %434 = vsyncpa [#allocation3], 1
    %435 = vsyncpa [#allocation6], 1
    %436 = vsyncpa [#allocation4], 1

</llo_original>
